<compile_context>
chip_gen: v7x
topology: tpu7x:2x2x1
jax: 0.10.0
libtpu: 0.0.40
codegen_flags: <defaults>
</compile_context>

<pallas_src>
import jax
import jax.numpy as jnp
from jax.experimental import pallas as pl
from jax.experimental.pallas import tpu as pltpu


def bam_kernel(x_ref, w1_ref, b1_ref, w2_ref, b2_ref, o_ref):
    # x_ref: (bt, C, HW) NCHW-flat activations (sublane = C, lane = HW).
    # w1_ref: (C, Cr)   b1_ref: (1, Cr)   w2_ref: (Cr, C)   b2_ref: (1, C)
    # o_ref: (bt, C, HW)
    hw = x_ref.shape[2]
    inv_hw = 1.0 / hw

    x = x_ref[...]                                               # (bt, C, HW)

    # ---- Squeeze: global average pool over H*W ------------------------------
    # Single vectorized lane-axis reduction with f32 accumulation.  The kernel
    # is HBM-bound, so the XLU/VPU have plenty of slack for this.
    pooled = jnp.sum(x, axis=2, dtype=jnp.float32) * inv_hw      # (bt, C) f32

    # ---- Excitation: the two 1x1 convs == dense layers on the pooled vector -
    # Weights stay in their storage dtype (bf16 fine on the MXU); f32 acc.
    h = jnp.dot(pooled.astype(w1_ref.dtype), w1_ref[...],
                preferred_element_type=jnp.float32) + b1_ref[...]  # (bt, Cr)
    h = jnp.maximum(h, 0.0)
    s = jnp.dot(h.astype(w2_ref.dtype), w2_ref[...],
                preferred_element_type=jnp.float32) + b2_ref[...]  # (bt, C)
    gate = jax.nn.sigmoid(s)                                       # (bt, C) f32

    # ---- Scale: per-channel gate broadcast over all spatial positions -------
    # Multiply in the activation dtype (single downcast of the tiny gate, no
    # f32 copy of the activation tile); one full-block store.
    o_ref[...] = (x * gate[:, :, None].astype(x_ref.dtype)).astype(o_ref.dtype)


def _vmem_policy():
    """Generation-aware policy.

    Returns (block_cap_bytes, vmem_limit_cap_bytes, num_cores_hint).
      v7x  (<= 64 MiB VMEM per TensorCore, 2 TCs): moderate blocks, 48 MiB cap,
           prefer an even grid split across the 2 cores.
      v5e / v6e (128 MiB VMEM, 1 TC): larger blocks allowed, higher limit cap,
           no multi-core grid constraint.
    Unknown / query failure falls back to the conservative v7x sizing (still
    correct everywhere, just smaller blocks).
    """
    vmem_bytes = None
    try:
        info = pltpu.get_tpu_info()
        vmem_bytes = getattr(info, "vmem_capacity_bytes", None)
    except Exception:
        vmem_bytes = None
    if vmem_bytes is None or vmem_bytes <= (64 << 20):
        return 8 << 20, 48 << 20, 2          # v7x-ish / unknown
    return 16 << 20, 100 << 20, 1            # v5e / v6e (128 MiB, single TC)


def _pick_block_batch(B, HW, C, itemsize, block_cap_bytes, num_cores):
    """Largest divisor of B whose block stays under block_cap_bytes.

    On multi-TensorCore parts, prefer divisors giving a grid that splits
    evenly across the cores (avoids a 2:1 imbalance on an otherwise
    perfectly parallel, bandwidth-bound loop)."""
    per_batch = HW * C * itemsize
    divisors = [d for d in range(1, B + 1) if B % d == 0]
    fits = [d for d in divisors if d * per_batch <= block_cap_bytes]
    if not fits:
        return 1
    if num_cores > 1:
        even = [d for d in fits if (B // d) % num_cores == 0]
        if even:
            return max(even)
        multi = [d for d in fits if B // d >= num_cores]
        if multi:
            return max(multi)
    return max(fits)


def bam_layer(x, conv1_w, conv1_b, conv2_w, conv2_b, *, block_batch=None):
    """BAMLayer forward.

    x:       (B, C, H, W)          NCHW, matching PyTorch.
    conv1_w: (C//16, C, 1, 1)      PyTorch Conv2d weight layout (out, in, 1, 1).
    conv1_b: (C//16,)
    conv2_w: (C, C//16, 1, 1)
    conv2_b: (C,)
    Returns (B, C, H, W), same layout as the input (no HBM transposes).
    """
    B, C, H, W = x.shape
    HW = H * W
    Cr = conv1_w.shape[0]

    # 1x1 conv weights -> right-multiply matrices (in, out) in the activation
    # dtype (bf16 is fine on the MXU with f32 accumulation); biases stay f32.
    w1 = conv1_w.reshape(Cr, C).T.astype(x.dtype)        # (C, Cr)
    w2 = conv2_w.reshape(C, Cr).T.astype(x.dtype)        # (Cr, C)
    b1 = conv1_b.reshape(1, Cr).astype(jnp.float32)
    b2 = conv2_b.reshape(1, C).astype(jnp.float32)

    # Free reshape (no transpose): the kernel works on NCHW-flat blocks.
    x_flat = x.reshape(B, C, HW)

    itemsize = x.dtype.itemsize
    block_cap, limit_cap, num_cores = _vmem_policy()
    if block_batch is None:
        bt = _pick_block_batch(B, HW, C, itemsize, block_cap, num_cores)
    else:
        bt = max(1, min(int(block_batch), B))
        while B % bt:
            bt -= 1
    grid = B // bt

    block_bytes = bt * HW * C * itemsize
    weight_bytes = ((w1.size + w2.size) * w1.dtype.itemsize
                    + (b1.size + b2.size) * 4)
    # 4 live activation blocks (double-buffered in + out), double-buffered
    # weights, small f32 temporaries (pooled/h/gate), plus slack.
    needed = (4 * block_bytes + 2 * weight_bytes
              + 4 * bt * (C + Cr) * 4 + (4 << 20))
    vmem_limit = int(max(16 << 20, min(needed, limit_cap)))
    if needed > limit_cap:
        vmem_limit = int(needed)   # single block larger than the normal cap:
                                   # better to request it than fail under the cap.

    cost = pl.CostEstimate(
        flops=int(B * HW * C                 # spatial pool (adds)
                  + 2 * B * C * Cr * 2       # two excitation matmuls
                  + B * HW * C),             # rescale
        transcendentals=int(B * C),          # sigmoid
        bytes_accessed=int(2 * B * HW * C * itemsize
                           + (w1.size + w2.size) * w1.dtype.itemsize),
    )

    out = pl.pallas_call(
        bam_kernel,
        out_shape=jax.ShapeDtypeStruct((B, C, HW), x.dtype),
        grid_spec=pltpu.PrefetchScalarGridSpec(
            num_scalar_prefetch=0,
            grid=(grid,),
            in_specs=[
                pl.BlockSpec((bt, C, HW), lambda i: (i, 0, 0)),
                pl.BlockSpec((C, Cr), lambda i: (0, 0)),
                pl.BlockSpec((1, Cr), lambda i: (0, 0)),
                pl.BlockSpec((Cr, C), lambda i: (0, 0)),
                pl.BlockSpec((1, C), lambda i: (0, 0)),
            ],
            out_specs=pl.BlockSpec((bt, C, HW), lambda i: (i, 0, 0)),
        ),
        compiler_params=pltpu.CompilerParams(
            dimension_semantics=("parallel",),
            vmem_limit_bytes=vmem_limit,
        ),
        cost_estimate=cost,
    )(x_flat, w1, b1, w2, b2)

    return out.reshape(B, C, H, W)


def bam_layer_ref(x, conv1_w, conv1_b, conv2_w, conv2_b):
    # Pure-JAX reference mirroring the PyTorch BAMLayer (1x1 convs with bias).
    B, C, H, W = x.shape
    Cr = conv1_w.shape[0]
    pool = jnp.mean(x, axis=(2, 3))                                  # (B, C)
    h = jnp.maximum(pool @ conv1_w.reshape(Cr, C).T + conv1_b, 0.0)  # (B, Cr)
    g = jax.nn.sigmoid(h @ conv2_w.reshape(C, Cr).T + conv2_b)       # (B, C)
    return x * g[:, :, None, None]


if __name__ == "__main__":
    # BAMLayer(inplanes=128): 1x1 convs 128 -> 8 -> 128 with bias.
    # H = W = 14 gives HW = 196 (realistic non-multiple-of-128 spatial size);
    # C = 128 keeps the excitation matmuls well shaped.
    B, C, H, W = 4, 128, 14, 14
    Cr = C // 16

    key = jax.random.PRNGKey(0)
    kx, kw1, kb1, kw2, kb2 = jax.random.split(key, 5)
    x = jax.random.normal(kx, (B, C, H, W), dtype=jnp.float32)
    conv1_w = jax.random.normal(kw1, (Cr, C, 1, 1), dtype=jnp.float32) * 0.1
    conv1_b = jax.random.normal(kb1, (Cr,), dtype=jnp.float32) * 0.1
    conv2_w = jax.random.normal(kw2, (C, Cr, 1, 1), dtype=jnp.float32) * 0.1
    conv2_b = jax.random.normal(kb2, (C,), dtype=jnp.float32) * 0.1

    out = jax.block_until_ready(
        bam_layer(x, conv1_w, conv1_b, conv2_w, conv2_b))
    ref = bam_layer_ref(x, conv1_w, conv1_b, conv2_w, conv2_b)
    assert out.shape == (B, C, H, W)
    assert jnp.allclose(out, ref, atol=1e-5, rtol=1e-5), \
        float(jnp.max(jnp.abs(out - ref)))
    print("KERNEL_OK")
</pallas_src>

<mosaic_0001>
module attributes {stable_mosaic.version = 11 : i64} {
  func.func @bam_kernel(%arg0: i32, %arg1: memref<2x128x196xf32, #tpu.memory_space<vmem>>, %arg2: memref<128x8xf32, #tpu.memory_space<vmem>>, %arg3: memref<1x8xf32, #tpu.memory_space<vmem>>, %arg4: memref<8x128xf32, #tpu.memory_space<vmem>>, %arg5: memref<1x128xf32, #tpu.memory_space<vmem>>, %arg6: memref<2x128x196xf32, #tpu.memory_space<vmem>>) attributes {dimension_semantics = [#tpu.dimension_semantics<parallel>], iteration_bounds = array<i64: 2>, scalar_prefetch = 0 : i64, scratch_operands = 0 : i64, tpu.core_type = #tpu.core_type<tc>, window_params = [{transform_indices = @transform_0, window_bounds = array<i64: 2, 128, 196>}, {pipeline_mode = #tpu.pipeline_mode<synchronous>, transform_indices = @transform_1, window_bounds = array<i64: 128, 8>}, {pipeline_mode = #tpu.pipeline_mode<synchronous>, transform_indices = @transform_2, window_bounds = array<i64: 1, 8>}, {pipeline_mode = #tpu.pipeline_mode<synchronous>, transform_indices = @transform_3, window_bounds = array<i64: 8, 128>}, {pipeline_mode = #tpu.pipeline_mode<synchronous>, transform_indices = @transform_4, window_bounds = array<i64: 1, 128>}, {transform_indices = @transform_5, window_bounds = array<i64: 2, 128, 196>}]} {
    %c0 = arith.constant 0 : index
    %c0_0 = arith.constant 0 : index
    %c0_1 = arith.constant 0 : index
    %0 = vector.load %arg1[%c0, %c0_0, %c0_1] : memref<2x128x196xf32, #tpu.memory_space<vmem>>, vector<2x128x196xf32>
    %cst = arith.constant dense<0.000000e+00> : vector<2x128xf32>
    %1 = vector.multi_reduction <add>, %0, %cst [2] : vector<2x128x196xf32> to vector<2x128xf32>
    %cst_2 = arith.constant 0.00510204071 : f32
    %2 = vector.broadcast %cst_2 : f32 to vector<2x128xf32>
    %3 = arith.mulf %1, %2 : vector<2x128xf32>
    %c0_3 = arith.constant 0 : index
    %c0_4 = arith.constant 0 : index
    %4 = vector.load %arg2[%c0_3, %c0_4] : memref<128x8xf32, #tpu.memory_space<vmem>>, vector<128x8xf32>
    %cst_5 = arith.constant dense<0.000000e+00> : vector<2x8xf32>
    %5 = tpu.matmul %3, %4, %cst_5 {dimension_numbers = #tpu.dot_dimension_numbers<[1], [0], [0], [1], [0, 0, 1, 1], [], []>} : vector<2x128xf32>, vector<128x8xf32>, vector<2x8xf32> -> vector<2x8xf32>
    %c0_6 = arith.constant 0 : index
    %c0_7 = arith.constant 0 : index
    %6 = vector.load %arg3[%c0_6, %c0_7] : memref<1x8xf32, #tpu.memory_space<vmem>>, vector<1x8xf32>
    %7 = vector.broadcast %6 : vector<1x8xf32> to vector<2x8xf32>
    %8 = arith.addf %5, %7 : vector<2x8xf32>
    %cst_8 = arith.constant 0.000000e+00 : f32
    %9 = vector.broadcast %cst_8 : f32 to vector<2x8xf32>
    %10 = arith.maximumf %8, %9 : vector<2x8xf32>
    %c0_9 = arith.constant 0 : index
    %c0_10 = arith.constant 0 : index
    %11 = vector.load %arg4[%c0_9, %c0_10] : memref<8x128xf32, #tpu.memory_space<vmem>>, vector<8x128xf32>
    %cst_11 = arith.constant dense<0.000000e+00> : vector<2x128xf32>
    %12 = tpu.matmul %10, %11, %cst_11 {dimension_numbers = #tpu.dot_dimension_numbers<[1], [0], [0], [1], [0, 0, 1, 1], [], []>} : vector<2x8xf32>, vector<8x128xf32>, vector<2x128xf32> -> vector<2x128xf32>
    %c0_12 = arith.constant 0 : index
    %c0_13 = arith.constant 0 : index
    %13 = vector.load %arg5[%c0_12, %c0_13] : memref<1x128xf32, #tpu.memory_space<vmem>>, vector<1x128xf32>
    %14 = vector.broadcast %13 : vector<1x128xf32> to vector<2x128xf32>
    %15 = arith.addf %12, %14 : vector<2x128xf32>
    %16 = arith.negf %15 : vector<2x128xf32>
    %17 = math.exp %16 : vector<2x128xf32>
    %cst_14 = arith.constant 1.000000e+00 : f32
    %18 = vector.broadcast %cst_14 : f32 to vector<2x128xf32>
    %19 = arith.addf %18, %17 : vector<2x128xf32>
    %20 = arith.divf %18, %19 : vector<2x128xf32>
    %21 = vector.shape_cast %20 : vector<2x128xf32> to vector<2x128x1xf32>
    %22 = vector.broadcast %21 : vector<2x128x1xf32> to vector<2x128x196xf32>
    %23 = arith.mulf %0, %22 : vector<2x128x196xf32>
    %c0_15 = arith.constant 0 : index
    %c0_16 = arith.constant 0 : index
    %c0_17 = arith.constant 0 : index
    %24 = vector.load %arg6[%c0_15, %c0_16, %c0_17] : memref<2x128x196xf32, #tpu.memory_space<vmem>>, vector<2x128x196xf32>
    tpu.vector_store %arg6[%c0_15, %c0_16, %c0_17], %23 {strides = array<i32>} : memref<2x128x196xf32, #tpu.memory_space<vmem>>, vector<2x128x196xf32>,
    return
  }
  func.func @transform_0(%arg0: i32) -> (i32, i32, i32) {
    %c0_i32 = arith.constant 0 : i32
    %c0_i32_0 = arith.constant 0 : i32
    %c0_i32_1 = arith.constant 0 : i32
    return %arg0, %c0_i32, %c0_i32_0 : i32, i32, i32
  }
  func.func @transform_1(%arg0: i32) -> (i32, i32) {
    %c0_i32 = arith.constant 0 : i32
    %c0_i32_0 = arith.constant 0 : i32
    %c0_i32_1 = arith.constant 0 : i32
    return %c0_i32, %c0_i32_0 : i32, i32
  }
  func.func @transform_2(%arg0: i32) -> (i32, i32) {
    %c0_i32 = arith.constant 0 : i32
    %c0_i32_0 = arith.constant 0 : i32
    %c0_i32_1 = arith.constant 0 : i32
    return %c0_i32, %c0_i32_0 : i32, i32
  }
  func.func @transform_3(%arg0: i32) -> (i32, i32) {
    %c0_i32 = arith.constant 0 : i32
    %c0_i32_0 = arith.constant 0 : i32
    %c0_i32_1 = arith.constant 0 : i32
    return %c0_i32, %c0_i32_0 : i32, i32
  }
  func.func @transform_4(%arg0: i32) -> (i32, i32) {
    %c0_i32 = arith.constant 0 : i32
    %c0_i32_0 = arith.constant 0 : i32
    %c0_i32_1 = arith.constant 0 : i32
    return %c0_i32, %c0_i32_0 : i32, i32
  }
  func.func @transform_5(%arg0: i32) -> (i32, i32, i32) {
    %c0_i32 = arith.constant 0 : i32
    %c0_i32_0 = arith.constant 0 : i32
    %c0_i32_1 = arith.constant 0 : i32
    return %arg0, %c0_i32, %c0_i32_0 : i32, i32, i32
  }
}

</mosaic_0001>

<llo_original>
// kernel: tpu_custom_call.1
$region0: #{tpu_custom_call.1}
  #allocation0 [shape = 'u32[]', space=smem, size = 0x4, offset = 0x4, fixed_abs, tag = 'smem constant byte address 0x4 - core index']
  #allocation1 [shape = 'u32[144,128]{1,0:T(1,128)}', space=vmem, size = 0x12000, scoped, tag = 'internal scratch']
  %s0 = inlined_call_operand.vmem [shape: f32[4,128,196], index: 0, kind: input, shape index: {}]
  %s1 = inlined_call_operand.vmem [shape: f32[128,8], index: 1, kind: input, shape index: {}]
  %s2 = inlined_call_operand.vmem [shape: f32[1,8], index: 2, kind: input, shape index: {}]
  %s3 = inlined_call_operand.vmem [shape: f32[8,128], index: 3, kind: input, shape index: {}]
  %s4 = inlined_call_operand.vmem [shape: f32[1,128], index: 4, kind: input, shape index: {}]
  %s5 = inlined_call_operand.vmem [shape: f32[4,128,196], index: 5, kind: output, shape index: {}]
  %s6 = sld [smem:[#allocation0]]
  $region53: #{tpu_custom_call.1} parent=0
    _
  %s8 = ssub.s32 1, %s6
  %s9 = scalar_select 0, %s8, %s6
  loop: start=0, step=1, limit=4
  $region2: #{tpu_custom_call.1} parent=0 // loop_pre_header
    _
  $region3: #{tpu_custom_call.1} parent=0 // loop_header
    %s11 = sphi 0, %s15
    %p12 = scmp.ge.s32.totalorder %s11, 4
    %s21 = sphi 0, %s23
    %s24 = sphi 0, %s21
    %s25 = sphi 0, %s24
    %s41 = sphi 0, %s25
    %s45 = sphi 0, %s45
    %s47 = sphi 0, %s45
    %s48 = sphi 0, %s47
    %s62 = sphi 0, %s48
    %s66 = sphi 0, %s66
    %s68 = sphi 0, %s66
    %s69 = sphi 0, %s68
    %s83 = sphi 0, %s69
    %s87 = sphi 0, %s87
    %s89 = sphi 0, %s87
    %s90 = sphi 0, %s89
    %s104 = sphi 0, %s90
    %s108 = sphi 0, %s108
    %s110 = sphi 0, %s108
    %s111 = sphi 0, %s110
    %s125 = sphi 0, %s111
    %s131 = sphi 0, %s133
    %s134 = sphi 0, %s131
    %s135 = sphi 0, %s134
    %s151 = sphi 0, %s135
  $region4: #{tpu_custom_call.1} parent=0 // loop_header_branch
    %14 = sbr.rel (%p12) target = $region8
  $region5: #{tpu_custom_call.1} parent=0 // loop_body
    %s16 = ssub.s32 %s11, 1
    %s17 = ssub.s32 %s11, 2
    %s18 = sadd.s32 %s11, 1
    %s19 = ssub.s32 %s11, %s18
    %p20 = scmp.eq.s32.totalorder %s19, 0
    %s22 = sadd.s32 %s21, 1
    %s23 = scalar_select %p20, %s21, %s22
    %p26 = pneg %p20
    %p27 = scmp.eq.s32.totalorder %s11, 1
    %p28 = por %p26, %p27
    %p29 = scmp.ne.s32.totalorder %s21, %s24
    %p30 = scmp.eq.s32.totalorder %s11, 0
    %p31 = por %p29, %p30
    %p32 = scmp.ne.s32.totalorder %s21, %s24
    %p33 = scmp.eq.s32.totalorder %s16, 1
    %p34 = por %p32, %p33
    %p35 = scmp.ne.s32.totalorder %s24, %s25
    %p36 = scmp.eq.s32.totalorder %s16, 0
    %p37 = por %p35, %p36
    %p38 = scmp.ne.s32.totalorder %s24, %s25
    %p39 = scmp.eq.s32.totalorder %s17, 1
    %p40 = por %p38, %p39
    %p42 = scmp.ne.s32.totalorder %s25, %s41
    %p43 = scmp.eq.s32.totalorder %s17, 0
    %p44 = por %p42, %p43
    %s46 = sadd.s32 %s45, 1
    %p49 = scmp.eq.s32.totalorder %s11, 1
    %p50 = scmp.ne.s32.totalorder %s45, %s47
    %p51 = scmp.eq.s32.totalorder %s11, 0
    %p52 = por %p50, %p51
    %p53 = scmp.ne.s32.totalorder %s45, %s47
    %p54 = scmp.eq.s32.totalorder %s16, 1
    %p55 = por %p53, %p54
    %p56 = scmp.ne.s32.totalorder %s47, %s48
    %p57 = scmp.eq.s32.totalorder %s16, 0
    %p58 = por %p56, %p57
    %p59 = scmp.ne.s32.totalorder %s47, %s48
    %p60 = scmp.eq.s32.totalorder %s17, 1
    %p61 = por %p59, %p60
    %p63 = scmp.ne.s32.totalorder %s48, %s62
    %p64 = scmp.eq.s32.totalorder %s17, 0
    %p65 = por %p63, %p64
    %s67 = sadd.s32 %s66, 1
    %p70 = scmp.eq.s32.totalorder %s11, 1
    %p71 = scmp.ne.s32.totalorder %s66, %s68
    %p72 = scmp.eq.s32.totalorder %s11, 0
    %p73 = por %p71, %p72
    %p74 = scmp.ne.s32.totalorder %s66, %s68
    %p75 = scmp.eq.s32.totalorder %s16, 1
    %p76 = por %p74, %p75
    %p77 = scmp.ne.s32.totalorder %s68, %s69
    %p78 = scmp.eq.s32.totalorder %s16, 0
    %p79 = por %p77, %p78
    %p80 = scmp.ne.s32.totalorder %s68, %s69
    %p81 = scmp.eq.s32.totalorder %s17, 1
    %p82 = por %p80, %p81
    %p84 = scmp.ne.s32.totalorder %s69, %s83
    %p85 = scmp.eq.s32.totalorder %s17, 0
    %p86 = por %p84, %p85
    %s88 = sadd.s32 %s87, 1
    %p91 = scmp.eq.s32.totalorder %s11, 1
    %p92 = scmp.ne.s32.totalorder %s87, %s89
    %p93 = scmp.eq.s32.totalorder %s11, 0
    %p94 = por %p92, %p93
    %p95 = scmp.ne.s32.totalorder %s87, %s89
    %p96 = scmp.eq.s32.totalorder %s16, 1
    %p97 = por %p95, %p96
    %p98 = scmp.ne.s32.totalorder %s89, %s90
    %p99 = scmp.eq.s32.totalorder %s16, 0
    %p100 = por %p98, %p99
    %p101 = scmp.ne.s32.totalorder %s89, %s90
    %p102 = scmp.eq.s32.totalorder %s17, 1
    %p103 = por %p101, %p102
    %p105 = scmp.ne.s32.totalorder %s90, %s104
    %p106 = scmp.eq.s32.totalorder %s17, 0
    %p107 = por %p105, %p106
    %s109 = sadd.s32 %s108, 1
    %p112 = scmp.eq.s32.totalorder %s11, 1
    %p113 = scmp.ne.s32.totalorder %s108, %s110
    %p114 = scmp.eq.s32.totalorder %s11, 0
    %p115 = por %p113, %p114
    %p116 = scmp.ne.s32.totalorder %s108, %s110
    %p117 = scmp.eq.s32.totalorder %s16, 1
    %p118 = por %p116, %p117
    %p119 = scmp.ne.s32.totalorder %s110, %s111
    %p120 = scmp.eq.s32.totalorder %s16, 0
    %p121 = por %p119, %p120
    %p122 = scmp.ne.s32.totalorder %s110, %s111
    %p123 = scmp.eq.s32.totalorder %s17, 1
    %p124 = por %p122, %p123
    %p126 = scmp.ne.s32.totalorder %s111, %s125
    %p127 = scmp.eq.s32.totalorder %s17, 0
    %p128 = por %p126, %p127
    %s129 = ssub.s32 %s11, %s18
    %p130 = scmp.eq.s32.totalorder %s129, 0
    %s132 = sadd.s32 %s131, 1
    %s133 = scalar_select %p130, %s131, %s132
    %p136 = pneg %p130
    %p137 = scmp.eq.s32.totalorder %s11, 1
    %p138 = por %p136, %p137
    %p139 = scmp.ne.s32.totalorder %s131, %s134
    %p140 = scmp.eq.s32.totalorder %s11, 0
    %p141 = por %p139, %p140
    %p142 = scmp.ne.s32.totalorder %s131, %s134
    %p143 = scmp.eq.s32.totalorder %s16, 1
    %p144 = por %p142, %p143
    %p145 = scmp.ne.s32.totalorder %s134, %s135
    %p146 = scmp.eq.s32.totalorder %s16, 0
    %p147 = por %p145, %p146
    %p148 = scmp.ne.s32.totalorder %s134, %s135
    %p149 = scmp.eq.s32.totalorder %s17, 1
    %p150 = por %p148, %p149
    %p152 = scmp.ne.s32.totalorder %s135, %s151
    %p153 = scmp.eq.s32.totalorder %s17, 0
    %p154 = por %p152, %p153
    %p155 = scmp.le.s32.totalorder 1, %s11
    %p156 = scmp.lt.s32.totalorder %s11, 3
    %p157 = pnand %p155, %p156
    %p158 = pneg %p157
    // Predicated region
    $region9: #{tpu_custom_call.1} parent=5 // pred_check
      _
    $region10: #{tpu_custom_call.1} parent=5 // pred_check_branch
      %160 = sbr.rel (%p157) target = $region12
    $region11: #{tpu_custom_call.1} parent=5 // pred_region
      %s161 = ssub.s32 %s11, 1
      // Predicated region
      $region13: #{tpu_custom_call.1} parent=11 // pred_check
        %p162 = pneg %p58
      $region14: #{tpu_custom_call.1} parent=11 // pred_check_branch
        %164 = sbr.rel (%p162) target = $region16
      $region15: #{tpu_custom_call.1} parent=11 // pred_region
        _
      $region16: #{tpu_custom_call.1} parent=11 // pred_fallthru
        _
      // Predicated region
      $region17: #{tpu_custom_call.1} parent=11 // pred_check
        %p165 = pneg %p79
      $region18: #{tpu_custom_call.1} parent=11 // pred_check_branch
        %167 = sbr.rel (%p165) target = $region20
      $region19: #{tpu_custom_call.1} parent=11 // pred_region
        _
      $region20: #{tpu_custom_call.1} parent=11 // pred_fallthru
        _
      // Predicated region
      $region21: #{tpu_custom_call.1} parent=11 // pred_check
        %p168 = pneg %p100
      $region22: #{tpu_custom_call.1} parent=11 // pred_check_branch
        %170 = sbr.rel (%p168) target = $region24
      $region23: #{tpu_custom_call.1} parent=11 // pred_region
        _
      $region24: #{tpu_custom_call.1} parent=11 // pred_fallthru
        _
      // Predicated region
      $region25: #{tpu_custom_call.1} parent=11 // pred_check
        %p171 = pneg %p121
      $region26: #{tpu_custom_call.1} parent=11 // pred_check_branch
        %173 = sbr.rel (%p171) target = $region28
      $region27: #{tpu_custom_call.1} parent=11 // pred_region
        _
      $region28: #{tpu_custom_call.1} parent=11 // pred_fallthru
        _
    $region12: #{tpu_custom_call.1} parent=5 // pred_fallthru
      _
    %p174 = scmp.lt.s32.totalorder %s11, 2
    // Predicated region
    $region29: #{tpu_custom_call.1} parent=5 // pred_check
      %p175 = pneg %p174
    $region30: #{tpu_custom_call.1} parent=5 // pred_check_branch
      %177 = sbr.rel (%p175) target = $region32
    $region31: #{tpu_custom_call.1} parent=5 // pred_region
      // Predicated region
      $region33: #{tpu_custom_call.1} parent=31 // pred_check
        %p178 = pneg %p31
      $region34: #{tpu_custom_call.1} parent=31 // pred_check_branch
        %180 = sbr.rel (%p178) target = $region36
      $region35: #{tpu_custom_call.1} parent=31 // pred_region
        %s181 = smul.u32 2, %s11
        %p182 = scmp.lt.s32.totalorder %s181, 3
        %s183 = scalar_select %p182, %s181, 3
        %s184 = smul.addr %s183, 32
        %s185 = smul.addr %s184, 8
        %s186 = scalar_lea.vmem %s0, %s185
        %s187 = smul.u32 2, %s11
      $region36: #{tpu_custom_call.1} parent=31 // pred_fallthru
        _
    $region32: #{tpu_custom_call.1} parent=5 // pred_fallthru
      _
    %p188 = scmp.le.s32.totalorder 1, %s11
    %p189 = scmp.lt.s32.totalorder %s11, 3
    %p190 = pnand %p188, %p189
    %p191 = pneg %p190
    // Predicated region
    $region37: #{tpu_custom_call.1} parent=5 // pred_check
      _
    $region38: #{tpu_custom_call.1} parent=5 // pred_check_branch
      %193 = sbr.rel (%p190) target = $region40
    $region39: #{tpu_custom_call.1} parent=5 // pred_region
      %s194 = ssub.s32 %s11, 1
      %s195 = smul.u32 2, %s16
      %p196 = scmp.lt.s32.totalorder %s195, 3
      %s197 = scalar_select %p196, %s195, 3
      %s198 = smul.addr %s197, 32
      %s199 = smul.addr %s198, 8
      %s200 = scalar_lea.vmem %s0, %s199
      %p201 = pneg %p37
      %p202 = pneg %p34
      %p203 = pneg %p58
      %p204 = pneg %p55
      %p205 = pneg %p79
      %p206 = pneg %p76
      %p207 = pneg %p100
      %p208 = pneg %p97
      %p209 = pneg %p121
      %p210 = pneg %p118
      %p211 = pneg %p147
      %p212 = pneg %p144
      %s213 = smul.u32 2, %s16
      %p214 = scmp.lt.s32.totalorder %s213, 3
      %s215 = scalar_select %p214, %s213, 3
      %s216 = smul.addr %s215, 32
      %s217 = smul.addr %s216, 8
      %s218 = scalar_lea.vmem %s5, %s217
      %s219 = smul.u32 2, %s16
      %p220 = scmp.lt.s32.totalorder %s219, 3
      %s221 = scalar_select %p220, %s219, 3
      %s222 = smul.addr %s221, 32
      %s223 = smul.addr %s222, 8
      %s224 = scalar_lea.vmem %s0, %s223
      %s225 = smul.u32 2, %s16
      %s226 = smul.u32 2, %s16
      %p227 = scmp.lt.s32.totalorder %s226, 3
      %s228 = scalar_select %p227, %s226, 3
      %s229 = smul.addr %s228, 32
      %s230 = smul.addr %s229, 8
      %s231 = scalar_lea.vmem %s5, %s230
      %s232 = smul.u32 2, %s16
      %v233 = vld [vmem:[%s224] sm:$0xff]
      %v234 = vld [vmem:[%s224 + $0x8] sm:$0xff]
      %v235 = vld [vmem:[%s224 + $0x10] sm:$0xff]
      %v236 = vld [vmem:[%s224 + $0x18] sm:$0xff]
      %v237 = vld [vmem:[%s224 + $0x20] sm:$0xff]
      %v238 = vld [vmem:[%s224 + $0x28] sm:$0xff]
      %v239 = vld [vmem:[%s224 + $0x30] sm:$0xff]
      %v240 = vld [vmem:[%s224 + $0x38] sm:$0xff]
      %v241 = vld [vmem:[%s224 + $0x40] sm:$0xff]
      %v242 = vld [vmem:[%s224 + $0x48] sm:$0xff]
      %v243 = vld [vmem:[%s224 + $0x50] sm:$0xff]
      %v244 = vld [vmem:[%s224 + $0x58] sm:$0xff]
      %v245 = vld [vmem:[%s224 + $0x60] sm:$0xff]
      %v246 = vld [vmem:[%s224 + $0x68] sm:$0xff]
      %v247 = vld [vmem:[%s224 + $0x70] sm:$0xff]
      %v248 = vld [vmem:[%s224 + $0x78] sm:$0xff]
      %v249 = vld [vmem:[%s224 + $0x80] sm:$0xff]
      %v250 = vld [vmem:[%s224 + $0x88] sm:$0xff]
      %v251 = vld [vmem:[%s224 + $0x90] sm:$0xff]
      %v252 = vld [vmem:[%s224 + $0x98] sm:$0xff]
      %v253 = vld [vmem:[%s224 + $0xa0] sm:$0xff]
      %v254 = vld [vmem:[%s224 + $0xa8] sm:$0xff]
      %v255 = vld [vmem:[%s224 + $0xb0] sm:$0xff]
      %v256 = vld [vmem:[%s224 + $0xb8] sm:$0xff]
      %v257 = vld [vmem:[%s224 + $0xc0] sm:$0xff]
      %v258 = vld [vmem:[%s224 + $0xc8] sm:$0xff]
      %v259 = vld [vmem:[%s224 + $0xd0] sm:$0xff]
      %v260 = vld [vmem:[%s224 + $0xd8] sm:$0xff]
      %v261 = vld [vmem:[%s224 + $0xe0] sm:$0xff]
      %v262 = vld [vmem:[%s224 + $0xe8] sm:$0xff]
      %v263 = vld [vmem:[%s224 + $0xf0] sm:$0xff]
      %v264 = vld [vmem:[%s224 + $0xf8] sm:$0xff]
      %v265 = vld [vmem:[%s224 + $0x100] sm:$0xff]
      %v266 = vld [vmem:[%s224 + $0x108] sm:$0xff]
      %v267 = vld [vmem:[%s224 + $0x110] sm:$0xff]
      %v268 = vld [vmem:[%s224 + $0x118] sm:$0xff]
      %v269 = vld [vmem:[%s224 + $0x120] sm:$0xff]
      %v270 = vld [vmem:[%s224 + $0x128] sm:$0xff]
      %v271 = vld [vmem:[%s224 + $0x130] sm:$0xff]
      %v272 = vld [vmem:[%s224 + $0x138] sm:$0xff]
      %v273 = vld [vmem:[%s224 + $0x140] sm:$0xff]
      %v274 = vld [vmem:[%s224 + $0x148] sm:$0xff]
      %v275 = vld [vmem:[%s224 + $0x150] sm:$0xff]
      %v276 = vld [vmem:[%s224 + $0x158] sm:$0xff]
      %v277 = vld [vmem:[%s224 + $0x160] sm:$0xff]
      %v278 = vld [vmem:[%s224 + $0x168] sm:$0xff]
      %v279 = vld [vmem:[%s224 + $0x170] sm:$0xff]
      %v280 = vld [vmem:[%s224 + $0x178] sm:$0xff]
      %v281 = vld [vmem:[%s224 + $0x180] sm:$0xff]
      %v282 = vld [vmem:[%s224 + $0x188] sm:$0xff]
      %v283 = vld [vmem:[%s224 + $0x190] sm:$0xff]
      %v284 = vld [vmem:[%s224 + $0x198] sm:$0xff]
      %v285 = vld [vmem:[%s224 + $0x1a0] sm:$0xff]
      %v286 = vld [vmem:[%s224 + $0x1a8] sm:$0xff]
      %v287 = vld [vmem:[%s224 + $0x1b0] sm:$0xff]
      %v288 = vld [vmem:[%s224 + $0x1b8] sm:$0xff]
      %v289 = vld [vmem:[%s224 + $0x1c0] sm:$0xff]
      %v290 = vld [vmem:[%s224 + $0x1c8] sm:$0xff]
      %v291 = vld [vmem:[%s224 + $0x1d0] sm:$0xff]
      %v292 = vld [vmem:[%s224 + $0x1d8] sm:$0xff]
      %v293 = vld [vmem:[%s224 + $0x1e0] sm:$0xff]
      %v294 = vld [vmem:[%s224 + $0x1e8] sm:$0xff]
      %v295 = vld [vmem:[%s224 + $0x1f0] sm:$0xff]
      %v296 = vld [vmem:[%s224 + $0x1f8] sm:$0xff]
      %vm297 = vcmask 556032
      %v298 = vsel %vm297, %v234, 0.0
      %v299 = vadd.f32 %v233, %v298
      %300 = vadd.xlane.f32.xlu0 %v299
      %v301 = vpop.xlane.xlu0 %300
      %v302 = vsel %vm297, %v236, 0.0
      %v303 = vadd.f32 %v235, %v302
      %304 = vadd.xlane.f32.xlu0 %v303
      %v305 = vpop.xlane.xlu0 %304
      %v306 = vsel %vm297, %v238, 0.0
      %v307 = vadd.f32 %v237, %v306
      %308 = vadd.xlane.f32.xlu0 %v307
      %v309 = vpop.xlane.xlu0 %308
      %v310 = vsel %vm297, %v240, 0.0
      %v311 = vadd.f32 %v239, %v310
      %312 = vadd.xlane.f32.xlu0 %v311
      %v313 = vpop.xlane.xlu0 %312
      %v314 = vsel %vm297, %v242, 0.0
      %v315 = vadd.f32 %v241, %v314
      %316 = vadd.xlane.f32.xlu0 %v315
      %v317 = vpop.xlane.xlu0 %316
      %v318 = vsel %vm297, %v244, 0.0
      %v319 = vadd.f32 %v243, %v318
      %320 = vadd.xlane.f32.xlu0 %v319
      %v321 = vpop.xlane.xlu0 %320
      %v322 = vsel %vm297, %v246, 0.0
      %v323 = vadd.f32 %v245, %v322
      %324 = vadd.xlane.f32.xlu0 %v323
      %v325 = vpop.xlane.xlu0 %324
      %v326 = vsel %vm297, %v248, 0.0
      %v327 = vadd.f32 %v247, %v326
      %328 = vadd.xlane.f32.xlu0 %v327
      %v329 = vpop.xlane.xlu0 %328
      %v330 = vsel %vm297, %v250, 0.0
      %v331 = vadd.f32 %v249, %v330
      %332 = vadd.xlane.f32.xlu0 %v331
      %v333 = vpop.xlane.xlu0 %332
      %v334 = vsel %vm297, %v252, 0.0
      %v335 = vadd.f32 %v251, %v334
      %336 = vadd.xlane.f32.xlu0 %v335
      %v337 = vpop.xlane.xlu0 %336
      %v338 = vsel %vm297, %v254, 0.0
      %v339 = vadd.f32 %v253, %v338
      %340 = vadd.xlane.f32.xlu0 %v339
      %v341 = vpop.xlane.xlu0 %340
      %v342 = vsel %vm297, %v256, 0.0
      %v343 = vadd.f32 %v255, %v342
      %344 = vadd.xlane.f32.xlu0 %v343
      %v345 = vpop.xlane.xlu0 %344
      %v346 = vsel %vm297, %v258, 0.0
      %v347 = vadd.f32 %v257, %v346
      %348 = vadd.xlane.f32.xlu0 %v347
      %v349 = vpop.xlane.xlu0 %348
      %v350 = vsel %vm297, %v260, 0.0
      %v351 = vadd.f32 %v259, %v350
      %352 = vadd.xlane.f32.xlu0 %v351
      %v353 = vpop.xlane.xlu0 %352
      %v354 = vsel %vm297, %v262, 0.0
      %v355 = vadd.f32 %v261, %v354
      %356 = vadd.xlane.f32.xlu0 %v355
      %v357 = vpop.xlane.xlu0 %356
      %v358 = vsel %vm297, %v264, 0.0
      %v359 = vadd.f32 %v263, %v358
      %360 = vadd.xlane.f32.xlu0 %v359
      %v361 = vpop.xlane.xlu0 %360
      %v362 = vsel %vm297, %v266, 0.0
      %v363 = vadd.f32 %v265, %v362
      %364 = vadd.xlane.f32.xlu0 %v363
      %v365 = vpop.xlane.xlu0 %364
      %v366 = vsel %vm297, %v268, 0.0
      %v367 = vadd.f32 %v267, %v366
      %368 = vadd.xlane.f32.xlu0 %v367
      %v369 = vpop.xlane.xlu0 %368
      %v370 = vsel %vm297, %v270, 0.0
      %v371 = vadd.f32 %v269, %v370
      %372 = vadd.xlane.f32.xlu0 %v371
      %v373 = vpop.xlane.xlu0 %372
      %v374 = vsel %vm297, %v272, 0.0
      %v375 = vadd.f32 %v271, %v374
      %376 = vadd.xlane.f32.xlu0 %v375
      %v377 = vpop.xlane.xlu0 %376
      %v378 = vsel %vm297, %v274, 0.0
      %v379 = vadd.f32 %v273, %v378
      %380 = vadd.xlane.f32.xlu0 %v379
      %v381 = vpop.xlane.xlu0 %380
      %v382 = vsel %vm297, %v276, 0.0
      %v383 = vadd.f32 %v275, %v382
      %384 = vadd.xlane.f32.xlu0 %v383
      %v385 = vpop.xlane.xlu0 %384
      %v386 = vsel %vm297, %v278, 0.0
      %v387 = vadd.f32 %v277, %v386
      %388 = vadd.xlane.f32.xlu0 %v387
      %v389 = vpop.xlane.xlu0 %388
      %v390 = vsel %vm297, %v280, 0.0
      %v391 = vadd.f32 %v279, %v390
      %392 = vadd.xlane.f32.xlu0 %v391
      %v393 = vpop.xlane.xlu0 %392
      %v394 = vsel %vm297, %v282, 0.0
      %v395 = vadd.f32 %v281, %v394
      %396 = vadd.xlane.f32.xlu0 %v395
      %v397 = vpop.xlane.xlu0 %396
      %v398 = vsel %vm297, %v284, 0.0
      %v399 = vadd.f32 %v283, %v398
      %400 = vadd.xlane.f32.xlu0 %v399
      %v401 = vpop.xlane.xlu0 %400
      %v402 = vsel %vm297, %v286, 0.0
      %v403 = vadd.f32 %v285, %v402
      %404 = vadd.xlane.f32.xlu0 %v403
      %v405 = vpop.xlane.xlu0 %404
      %v406 = vsel %vm297, %v288, 0.0
      %v407 = vadd.f32 %v287, %v406
      %408 = vadd.xlane.f32.xlu0 %v407
      %v409 = vpop.xlane.xlu0 %408
      %v410 = vsel %vm297, %v290, 0.0
      %v411 = vadd.f32 %v289, %v410
      %412 = vadd.xlane.f32.xlu0 %v411
      %v413 = vpop.xlane.xlu0 %412
      %v414 = vsel %vm297, %v292, 0.0
      %v415 = vadd.f32 %v291, %v414
      %416 = vadd.xlane.f32.xlu0 %v415
      %v417 = vpop.xlane.xlu0 %416
      %v418 = vsel %vm297, %v294, 0.0
      %v419 = vadd.f32 %v293, %v418
      %420 = vadd.xlane.f32.xlu0 %v419
      %v421 = vpop.xlane.xlu0 %420
      %v422 = vsel %vm297, %v296, 0.0
      %v423 = vadd.f32 %v295, %v422
      %424 = vadd.xlane.f32.xlu0 %v423
      %v425 = vpop.xlane.xlu0 %424
      %v426 = vmul.f32 %v301, 0.0051020407
      %v427 = vmul.f32 %v305, 0.0051020407
      %v428 = vmul.f32 %v309, 0.0051020407
      %v429 = vmul.f32 %v313, 0.0051020407
      %v430 = vmul.f32 %v317, 0.0051020407
      %v431 = vmul.f32 %v321, 0.0051020407
      %v432 = vmul.f32 %v325, 0.0051020407
      %v433 = vmul.f32 %v329, 0.0051020407
      %v434 = vmul.f32 %v333, 0.0051020407
      %v435 = vmul.f32 %v337, 0.0051020407
      %v436 = vmul.f32 %v341, 0.0051020407
      %v437 = vmul.f32 %v345, 0.0051020407
      %v438 = vmul.f32 %v349, 0.0051020407
      %v439 = vmul.f32 %v353, 0.0051020407
      %v440 = vmul.f32 %v357, 0.0051020407
      %v441 = vmul.f32 %v361, 0.0051020407
      %v442 = vmul.f32 %v365, 0.0051020407
      %v443 = vmul.f32 %v369, 0.0051020407
      %v444 = vmul.f32 %v373, 0.0051020407
      %v445 = vmul.f32 %v377, 0.0051020407
      %v446 = vmul.f32 %v381, 0.0051020407
      %v447 = vmul.f32 %v385, 0.0051020407
      %v448 = vmul.f32 %v389, 0.0051020407
      %v449 = vmul.f32 %v393, 0.0051020407
      %v450 = vmul.f32 %v397, 0.0051020407
      %v451 = vmul.f32 %v401, 0.0051020407
      %v452 = vmul.f32 %v405, 0.0051020407
      %v453 = vmul.f32 %v409, 0.0051020407
      %v454 = vmul.f32 %v413, 0.0051020407
      %v455 = vmul.f32 %v417, 0.0051020407
      %v456 = vmul.f32 %v421, 0.0051020407
      %v457 = vmul.f32 %v425, 0.0051020407
      %v458 = vld [vmem:[%s1] sm:$0xff]
      %v459 = vld [vmem:[%s1 + $0x8] sm:$0xff]
      %v460 = vld [vmem:[%s1 + $0x10] sm:$0xff]
      %v461 = vld [vmem:[%s1 + $0x18] sm:$0xff]
      %v462 = vld [vmem:[%s1 + $0x20] sm:$0xff]
      %v463 = vld [vmem:[%s1 + $0x28] sm:$0xff]
      %v464 = vld [vmem:[%s1 + $0x30] sm:$0xff]
      %v465 = vld [vmem:[%s1 + $0x38] sm:$0xff]
      %v466 = vld [vmem:[%s1 + $0x40] sm:$0xff]
      %v467 = vld [vmem:[%s1 + $0x48] sm:$0xff]
      %v468 = vld [vmem:[%s1 + $0x50] sm:$0xff]
      %v469 = vld [vmem:[%s1 + $0x58] sm:$0xff]
      %v470 = vld [vmem:[%s1 + $0x60] sm:$0xff]
      %v471 = vld [vmem:[%s1 + $0x68] sm:$0xff]
      %v472 = vld [vmem:[%s1 + $0x70] sm:$0xff]
      %v473 = vld [vmem:[%s1 + $0x78] sm:$0xff]
      %v474 = vld [vmem:[%s2] sm:$0x1]
      %v476 = vlaneseq
      %v477 = vshrl.u32 %v476, 7
      %v478 = vsub.s32 0, %v477
      %v479 = vrot.slane %v474, %v478
      %v513 = vlaneseq
      %v514 = vand.u32 %v513, 127
      %v515 = vlaneseq
      %v516 = vshrl.u32 %v515, 7
      %v517 = vsub.s32 %v514, %v516
      %v518 = vrot.slane %v426, %v517
      %v519 = vadd.s32 %v514, 4294967288
      %v520 = vlaneseq
      %v521 = vshrl.u32 %v520, 7
      %v522 = vsub.s32 %v519, %v521
      %v523 = vrot.slane %v427, %v522
      %vm524 = vcmask 130112
      %v525 = vsel %vm524, %v523, %v518
      %v526 = vadd.s32 %v514, 4294967280
      %v527 = vlaneseq
      %v528 = vshrl.u32 %v527, 7
      %v529 = vsub.s32 %v526, %v528
      %v530 = vrot.slane %v428, %v529
      %vm531 = vcmask 195712
      %v532 = vsel %vm531, %v530, %v525
      %v533 = vadd.s32 %v514, 4294967272
      %v534 = vlaneseq
      %v535 = vshrl.u32 %v534, 7
      %v536 = vsub.s32 %v533, %v535
      %v537 = vrot.slane %v429, %v536
      %vm538 = vcmask 261312
      %v539 = vsel %vm538, %v537, %v532
      %v540 = vadd.s32 %v514, 4294967264
      %v541 = vlaneseq
      %v542 = vshrl.u32 %v541, 7
      %v543 = vsub.s32 %v540, %v542
      %v544 = vrot.slane %v430, %v543
      %vm545 = vcmask 326912
      %v546 = vsel %vm545, %v544, %v539
      %v547 = vadd.s32 %v514, 4294967256
      %v548 = vlaneseq
      %v549 = vshrl.u32 %v548, 7
      %v550 = vsub.s32 %v547, %v549
      %v551 = vrot.slane %v431, %v550
      %vm552 = vcmask 392512
      %v553 = vsel %vm552, %v551, %v546
      %v554 = vadd.s32 %v514, 4294967248
      %v555 = vlaneseq
      %v556 = vshrl.u32 %v555, 7
      %v557 = vsub.s32 %v554, %v556
      %v558 = vrot.slane %v432, %v557
      %vm559 = vcmask 458112
      %v560 = vsel %vm559, %v558, %v553
      %v561 = vadd.s32 %v514, 4294967240
      %v562 = vlaneseq
      %v563 = vshrl.u32 %v562, 7
      %v564 = vsub.s32 %v561, %v563
      %v565 = vrot.slane %v433, %v564
      %vm566 = vcmask 523712
      %v567 = vsel %vm566, %v565, %v560
      %v568 = vadd.s32 %v514, 4294967232
      %v569 = vlaneseq
      %v570 = vshrl.u32 %v569, 7
      %v571 = vsub.s32 %v568, %v570
      %v572 = vrot.slane %v434, %v571
      %vm573 = vcmask 589312
      %v574 = vsel %vm573, %v572, %v567
      %v575 = vadd.s32 %v514, 4294967224
      %v576 = vlaneseq
      %v577 = vshrl.u32 %v576, 7
      %v578 = vsub.s32 %v575, %v577
      %v579 = vrot.slane %v435, %v578
      %vm580 = vcmask 654912
      %v581 = vsel %vm580, %v579, %v574
      %v582 = vadd.s32 %v514, 4294967216
      %v583 = vlaneseq
      %v584 = vshrl.u32 %v583, 7
      %v585 = vsub.s32 %v582, %v584
      %v586 = vrot.slane %v436, %v585
      %vm587 = vcmask 720512
      %v588 = vsel %vm587, %v586, %v581
      %v589 = vadd.s32 %v514, 4294967208
      %v590 = vlaneseq
      %v591 = vshrl.u32 %v590, 7
      %v592 = vsub.s32 %v589, %v591
      %v593 = vrot.slane %v437, %v592
      %vm594 = vcmask 786112
      %v595 = vsel %vm594, %v593, %v588
      %v596 = vadd.s32 %v514, 4294967200
      %v597 = vlaneseq
      %v598 = vshrl.u32 %v597, 7
      %v599 = vsub.s32 %v596, %v598
      %v600 = vrot.slane %v438, %v599
      %vm601 = vcmask 851712
      %v602 = vsel %vm601, %v600, %v595
      %v603 = vadd.s32 %v514, 4294967192
      %v604 = vlaneseq
      %v605 = vshrl.u32 %v604, 7
      %v606 = vsub.s32 %v603, %v605
      %v607 = vrot.slane %v439, %v606
      %vm608 = vcmask 917312
      %v609 = vsel %vm608, %v607, %v602
      %v610 = vadd.s32 %v514, 4294967184
      %v611 = vlaneseq
      %v612 = vshrl.u32 %v611, 7
      %v613 = vsub.s32 %v610, %v612
      %v614 = vrot.slane %v440, %v613
      %vm615 = vcmask 982912
      %v616 = vsel %vm615, %v614, %v609
      %v617 = vadd.s32 %v514, 4294967176
      %v618 = vlaneseq
      %v619 = vshrl.u32 %v618, 7
      %v620 = vsub.s32 %v617, %v619
      %v621 = vrot.slane %v441, %v620
      %vm622 = vcmask 1048512
      %v623 = vsel %vm622, %v621, %v616
      %v624 = vlaneseq
      %v625 = vshrl.u32 %v624, 7
      %v626 = vsub.s32 %v514, %v625
      %v627 = vrot.slane %v442, %v626
      %v628 = vlaneseq
      %v629 = vshrl.u32 %v628, 7
      %v630 = vsub.s32 %v519, %v629
      %v631 = vrot.slane %v443, %v630
      %v632 = vsel %vm524, %v631, %v627
      %v633 = vlaneseq
      %v634 = vshrl.u32 %v633, 7
      %v635 = vsub.s32 %v526, %v634
      %v636 = vrot.slane %v444, %v635
      %v637 = vsel %vm531, %v636, %v632
      %v638 = vlaneseq
      %v639 = vshrl.u32 %v638, 7
      %v640 = vsub.s32 %v533, %v639
      %v641 = vrot.slane %v445, %v640
      %v642 = vsel %vm538, %v641, %v637
      %v643 = vlaneseq
      %v644 = vshrl.u32 %v643, 7
      %v645 = vsub.s32 %v540, %v644
      %v646 = vrot.slane %v446, %v645
      %v647 = vsel %vm545, %v646, %v642
      %v648 = vlaneseq
      %v649 = vshrl.u32 %v648, 7
      %v650 = vsub.s32 %v547, %v649
      %v651 = vrot.slane %v447, %v650
      %v652 = vsel %vm552, %v651, %v647
      %v653 = vlaneseq
      %v654 = vshrl.u32 %v653, 7
      %v655 = vsub.s32 %v554, %v654
      %v656 = vrot.slane %v448, %v655
      %v657 = vsel %vm559, %v656, %v652
      %v658 = vlaneseq
      %v659 = vshrl.u32 %v658, 7
      %v660 = vsub.s32 %v561, %v659
      %v661 = vrot.slane %v449, %v660
      %v662 = vsel %vm566, %v661, %v657
      %v663 = vlaneseq
      %v664 = vshrl.u32 %v663, 7
      %v665 = vsub.s32 %v568, %v664
      %v666 = vrot.slane %v450, %v665
      %v667 = vsel %vm573, %v666, %v662
      %v668 = vlaneseq
      %v669 = vshrl.u32 %v668, 7
      %v670 = vsub.s32 %v575, %v669
      %v671 = vrot.slane %v451, %v670
      %v672 = vsel %vm580, %v671, %v667
      %v673 = vlaneseq
      %v674 = vshrl.u32 %v673, 7
      %v675 = vsub.s32 %v582, %v674
      %v676 = vrot.slane %v452, %v675
      %v677 = vsel %vm587, %v676, %v672
      %v678 = vlaneseq
      %v679 = vshrl.u32 %v678, 7
      %v680 = vsub.s32 %v589, %v679
      %v681 = vrot.slane %v453, %v680
      %v682 = vsel %vm594, %v681, %v677
      %v683 = vlaneseq
      %v684 = vshrl.u32 %v683, 7
      %v685 = vsub.s32 %v596, %v684
      %v686 = vrot.slane %v454, %v685
      %v687 = vsel %vm601, %v686, %v682
      %v688 = vlaneseq
      %v689 = vshrl.u32 %v688, 7
      %v690 = vsub.s32 %v603, %v689
      %v691 = vrot.slane %v455, %v690
      %v692 = vsel %vm608, %v691, %v687
      %v693 = vlaneseq
      %v694 = vshrl.u32 %v693, 7
      %v695 = vsub.s32 %v610, %v694
      %v696 = vrot.slane %v456, %v695
      %v697 = vsel %vm615, %v696, %v692
      %v698 = vlaneseq
      %v699 = vshrl.u32 %v698, 7
      %v700 = vsub.s32 %v617, %v699
      %v701 = vrot.slane %v457, %v700
      %v702 = vsel %vm622, %v701, %v697
      %vm703 = vcmask 1041409
      %v704 = vsel %vm703, %v702, %v623
      %706 = vmatprep.subr.mxu0 0.0
      %707 = vmatpush1.msra.mxu0 %v458
      %708 = vmatprep.subr.mxu0 0.0
      %709 = vmatpush1.msra.mxu0 %v459
      %710 = vmatprep.subr.mxu0 0.0
      %711 = vmatpush1.msra.mxu0 %v460
      %712 = vmatprep.subr.mxu0 0.0
      %713 = vmatpush1.msra.mxu0 %v461
      %714 = vmatprep.subr.mxu0 0.0
      %715 = vmatpush1.msra.mxu0 %v462
      %716 = vmatprep.subr.mxu0 0.0
      %717 = vmatpush1.msra.mxu0 %v463
      %718 = vmatprep.subr.mxu0 0.0
      %719 = vmatpush1.msra.mxu0 %v464
      %720 = vmatprep.subr.mxu0 0.0
      %721 = vmatpush1.msra.mxu0 %v465
      %722 = vmatprep.subr.mxu0 0.0
      %723 = vmatpush1.msra.mxu0 %v466
      %724 = vmatprep.subr.mxu0 0.0
      %725 = vmatpush1.msra.mxu0 %v467
      %726 = vmatprep.subr.mxu0 0.0
      %727 = vmatpush1.msra.mxu0 %v468
      %728 = vmatprep.subr.mxu0 0.0
      %729 = vmatpush1.msra.mxu0 %v469
      %730 = vmatprep.subr.mxu0 0.0
      %731 = vmatpush1.msra.mxu0 %v470
      %732 = vmatprep.subr.mxu0 0.0
      %733 = vmatpush1.msra.mxu0 %v471
      %734 = vmatprep.subr.mxu0 0.0
      %735 = vmatpush1.msra.mxu0 %v472
      %736 = vmatprep.subr.mxu0 0.0
      %737 = vmatpush1.msra.mxu0 %v473
      %738 = vmatprep.subr.mxu0 0.0
      %739 = vmatpush1.msra.mxu0 0.0
      %740 = vmatprep.subr.mxu0 0.0
      %741 = vmatpush1.msra.mxu0 0.0
      %742 = vmatprep.subr.mxu0 0.0
      %743 = vmatpush1.msra.mxu0 0.0
      %744 = vmatprep.subr.mxu0 0.0
      %745 = vmatpush1.msra.mxu0 0.0
      %746 = vmatprep.subr.mxu0 0.0
      %747 = vmatpush1.msra.mxu0 0.0
      %748 = vmatprep.subr.mxu0 0.0
      %749 = vmatpush1.msra.mxu0 0.0
      %750 = vmatprep.subr.mxu0 0.0
      %751 = vmatpush1.msra.mxu0 0.0
      %752 = vmatprep.subr.mxu0 0.0
      %753 = vmatpush1.msra.mxu0 0.0
      %754 = vmatprep.subr.mxu0 0.0
      %755 = vmatpush1.msra.mxu0 0.0
      %756 = vmatprep.subr.mxu0 0.0
      %757 = vmatpush1.msra.mxu0 0.0
      %758 = vmatprep.subr.mxu0 0.0
      %759 = vmatpush1.msra.mxu0 0.0
      %760 = vmatprep.subr.mxu0 0.0
      %761 = vmatpush1.msra.mxu0 0.0
      %762 = vmatprep.subr.mxu0 0.0
      %763 = vmatpush1.msra.mxu0 0.0
      %764 = vmatprep.subr.mxu0 0.0
      %765 = vmatpush1.msra.mxu0 0.0
      %766 = vmatprep.subr.mxu0 0.0
      %767 = vmatpush1.msra.mxu0 0.0
      %768 = vmatprep.subr.mxu0 0.0
      %769 = vmatpush1.msra.mxu0 0.0
      %770 = vmatprep.mubr.f32.mxu0 0.0
      %771 = vmatmul.mubr.f32.gmra.mrb[0].mxu0 %v704
      %v772 = vpop.f32.mrb[0].mxu0
      %v773 = vadd.f32 %v479, %v772
      %v774 = vpop.f32.mrb[0].mxu0
      %775 = vdwg.mxu0
      %v776 = vmax.f32 %v773, 0.0
      %v777 = vld [vmem:[%s3] sm:$0xff]
      %v778 = vld [vmem:[%s4] sm:$0x1]
      %v780 = vlaneseq
      %v781 = vshrl.u32 %v780, 7
      %v782 = vsub.s32 0, %v781
      %v783 = vrot.slane %v778, %v782
      %vm785 = vcmask 64512
      %v787 = vsel %vm785, %v776, 0
      %789 = vmatprep.subr.mxu0 0.0
      %790 = vmatpush1.msra.mxu0 %v777
      %791 = vmatprep.subr.mxu0 0.0
      %792 = vmatpush1.msra.mxu0 0.0
      %793 = vmatprep.subr.mxu0 0.0
      %794 = vmatpush1.msra.mxu0 0.0
      %795 = vmatprep.subr.mxu0 0.0
      %796 = vmatpush1.msra.mxu0 0.0
      %797 = vmatprep.subr.mxu0 0.0
      %798 = vmatpush1.msra.mxu0 0.0
      %799 = vmatprep.subr.mxu0 0.0
      %800 = vmatpush1.msra.mxu0 0.0
      %801 = vmatprep.subr.mxu0 0.0
      %802 = vmatpush1.msra.mxu0 0.0
      %803 = vmatprep.subr.mxu0 0.0
      %804 = vmatpush1.msra.mxu0 0.0
      %805 = vmatprep.subr.mxu0 0.0
      %806 = vmatpush1.msra.mxu0 0.0
      %807 = vmatprep.subr.mxu0 0.0
      %808 = vmatpush1.msra.mxu0 0.0
      %809 = vmatprep.subr.mxu0 0.0
      %810 = vmatpush1.msra.mxu0 0.0
      %811 = vmatprep.subr.mxu0 0.0
      %812 = vmatpush1.msra.mxu0 0.0
      %813 = vmatprep.subr.mxu0 0.0
      %814 = vmatpush1.msra.mxu0 0.0
      %815 = vmatprep.subr.mxu0 0.0
      %816 = vmatpush1.msra.mxu0 0.0
      %817 = vmatprep.subr.mxu0 0.0
      %818 = vmatpush1.msra.mxu0 0.0
      %819 = vmatprep.subr.mxu0 0.0
      %820 = vmatpush1.msra.mxu0 0.0
      %821 = vmatprep.subr.mxu0 0.0
      %822 = vmatpush1.msra.mxu0 0.0
      %823 = vmatprep.subr.mxu0 0.0
      %824 = vmatpush1.msra.mxu0 0.0
      %825 = vmatprep.subr.mxu0 0.0
      %826 = vmatpush1.msra.mxu0 0.0
      %827 = vmatprep.subr.mxu0 0.0
      %828 = vmatpush1.msra.mxu0 0.0
      %829 = vmatprep.subr.mxu0 0.0
      %830 = vmatpush1.msra.mxu0 0.0
      %831 = vmatprep.subr.mxu0 0.0
      %832 = vmatpush1.msra.mxu0 0.0
      %833 = vmatprep.subr.mxu0 0.0
      %834 = vmatpush1.msra.mxu0 0.0
      %835 = vmatprep.subr.mxu0 0.0
      %836 = vmatpush1.msra.mxu0 0.0
      %837 = vmatprep.subr.mxu0 0.0
      %838 = vmatpush1.msra.mxu0 0.0
      %839 = vmatprep.subr.mxu0 0.0
      %840 = vmatpush1.msra.mxu0 0.0
      %841 = vmatprep.subr.mxu0 0.0
      %842 = vmatpush1.msra.mxu0 0.0
      %843 = vmatprep.subr.mxu0 0.0
      %844 = vmatpush1.msra.mxu0 0.0
      %845 = vmatprep.subr.mxu0 0.0
      %846 = vmatpush1.msra.mxu0 0.0
      %847 = vmatprep.subr.mxu0 0.0
      %848 = vmatpush1.msra.mxu0 0.0
      %849 = vmatprep.subr.mxu0 0.0
      %850 = vmatpush1.msra.mxu0 0.0
      %851 = vmatprep.subr.mxu0 0.0
      %852 = vmatpush1.msra.mxu0 0.0
      %853 = vmatprep.mubr.f32.mxu0 0.0
      %854 = vmatmul.mubr.f32.gmra.mrb[0].mxu0 %v787
      %v855 = vpop.f32.mrb[0].mxu0
      %v856 = vadd.f32 %v783, %v855
      %v857 = vpop.f32.mrb[0].mxu0
      %858 = vdwg.mxu0
      %v859 = vxor.u32 %v856, 2147483648
      %v860 = vmul.f32 %v859, 1.442695
      %v861 = vpow.pop %v860
      %v862 = vadd.f32 %v861, 1.0
      %v863 = vrcp.pop %v862
      %v864 = vmul.f32 1.0, %v863
      %v865 = vlaneseq
      %v866 = vshrl.u32 %v865, 7
      %v867 = vsub.s32 0, %v866
      %v868 = vrot.slane %v864, %v867
      %870 = vbcast.lane.b32.xlu0 %v868, 256
      %v871 = vpop.permute.xlu0 %870
      %s873 = sor.u32 256, 8
      %874 = vbcast.lane.b32.xlu0 %v868, %s873
      %v875 = vpop.permute.xlu0 %874
      %s877 = sor.u32 256, 16
      %878 = vbcast.lane.b32.xlu0 %v868, %s877
      %v879 = vpop.permute.xlu0 %878
      %s881 = sor.u32 256, 24
      %882 = vbcast.lane.b32.xlu0 %v868, %s881
      %v883 = vpop.permute.xlu0 %882
      %s885 = sor.u32 256, 32
      %886 = vbcast.lane.b32.xlu0 %v868, %s885
      %v887 = vpop.permute.xlu0 %886
      %s889 = sor.u32 256, 40
      %890 = vbcast.lane.b32.xlu0 %v868, %s889
      %v891 = vpop.permute.xlu0 %890
      %s893 = sor.u32 256, 48
      %894 = vbcast.lane.b32.xlu0 %v868, %s893
      %v895 = vpop.permute.xlu0 %894
      %s897 = sor.u32 256, 56
      %898 = vbcast.lane.b32.xlu0 %v868, %s897
      %v899 = vpop.permute.xlu0 %898
      %s901 = sor.u32 256, 64
      %902 = vbcast.lane.b32.xlu0 %v868, %s901
      %v903 = vpop.permute.xlu0 %902
      %s905 = sor.u32 256, 72
      %906 = vbcast.lane.b32.xlu0 %v868, %s905
      %v907 = vpop.permute.xlu0 %906
      %s909 = sor.u32 256, 80
      %910 = vbcast.lane.b32.xlu0 %v868, %s909
      %v911 = vpop.permute.xlu0 %910
      %s913 = sor.u32 256, 88
      %914 = vbcast.lane.b32.xlu0 %v868, %s913
      %v915 = vpop.permute.xlu0 %914
      %s917 = sor.u32 256, 96
      %918 = vbcast.lane.b32.xlu0 %v868, %s917
      %v919 = vpop.permute.xlu0 %918
      %s921 = sor.u32 256, 104
      %922 = vbcast.lane.b32.xlu0 %v868, %s921
      %v923 = vpop.permute.xlu0 %922
      %s925 = sor.u32 256, 112
      %926 = vbcast.lane.b32.xlu0 %v868, %s925
      %v927 = vpop.permute.xlu0 %926
      %s929 = sor.u32 256, 120
      %930 = vbcast.lane.b32.xlu0 %v868, %s929
      %v931 = vpop.permute.xlu0 %930
      %v932 = vlaneseq
      %v933 = vshrl.u32 %v932, 7
      %v934 = vsub.s32 1, %v933
      %v935 = vrot.slane %v864, %v934
      %937 = vbcast.lane.b32.xlu0 %v935, 256
      %v938 = vpop.permute.xlu0 %937
      %s940 = sor.u32 256, 8
      %941 = vbcast.lane.b32.xlu0 %v935, %s940
      %v942 = vpop.permute.xlu0 %941
      %s944 = sor.u32 256, 16
      %945 = vbcast.lane.b32.xlu0 %v935, %s944
      %v946 = vpop.permute.xlu0 %945
      %s948 = sor.u32 256, 24
      %949 = vbcast.lane.b32.xlu0 %v935, %s948
      %v950 = vpop.permute.xlu0 %949
      %s952 = sor.u32 256, 32
      %953 = vbcast.lane.b32.xlu0 %v935, %s952
      %v954 = vpop.permute.xlu0 %953
      %s956 = sor.u32 256, 40
      %957 = vbcast.lane.b32.xlu0 %v935, %s956
      %v958 = vpop.permute.xlu0 %957
      %s960 = sor.u32 256, 48
      %961 = vbcast.lane.b32.xlu0 %v935, %s960
      %v962 = vpop.permute.xlu0 %961
      %s964 = sor.u32 256, 56
      %965 = vbcast.lane.b32.xlu0 %v935, %s964
      %v966 = vpop.permute.xlu0 %965
      %s968 = sor.u32 256, 64
      %969 = vbcast.lane.b32.xlu0 %v935, %s968
      %v970 = vpop.permute.xlu0 %969
      %s972 = sor.u32 256, 72
      %973 = vbcast.lane.b32.xlu0 %v935, %s972
      %v974 = vpop.permute.xlu0 %973
      %s976 = sor.u32 256, 80
      %977 = vbcast.lane.b32.xlu0 %v935, %s976
      %v978 = vpop.permute.xlu0 %977
      %s980 = sor.u32 256, 88
      %981 = vbcast.lane.b32.xlu0 %v935, %s980
      %v982 = vpop.permute.xlu0 %981
      %s984 = sor.u32 256, 96
      %985 = vbcast.lane.b32.xlu0 %v935, %s984
      %v986 = vpop.permute.xlu0 %985
      %s988 = sor.u32 256, 104
      %989 = vbcast.lane.b32.xlu0 %v935, %s988
      %v990 = vpop.permute.xlu0 %989
      %s992 = sor.u32 256, 112
      %993 = vbcast.lane.b32.xlu0 %v935, %s992
      %v994 = vpop.permute.xlu0 %993
      %s996 = sor.u32 256, 120
      %997 = vbcast.lane.b32.xlu0 %v935, %s996
      %v998 = vpop.permute.xlu0 %997
      %v999 = vmul.f32 %v233, %v871
      %v1000 = vmul.f32 %v234, %v871
      %v1001 = vmul.f32 %v235, %v875
      %v1002 = vmul.f32 %v236, %v875
      %v1003 = vmul.f32 %v237, %v879
      %v1004 = vmul.f32 %v238, %v879
      %v1005 = vmul.f32 %v239, %v883
      %v1006 = vmul.f32 %v240, %v883
      %v1007 = vmul.f32 %v241, %v887
      %v1008 = vmul.f32 %v242, %v887
      %v1009 = vmul.f32 %v243, %v891
      %v1010 = vmul.f32 %v244, %v891
      %v1011 = vmul.f32 %v245, %v895
      %v1012 = vmul.f32 %v246, %v895
      %v1013 = vmul.f32 %v247, %v899
      %v1014 = vmul.f32 %v248, %v899
      %v1015 = vmul.f32 %v249, %v903
      %v1016 = vmul.f32 %v250, %v903
      %v1017 = vmul.f32 %v251, %v907
      %v1018 = vmul.f32 %v252, %v907
      %v1019 = vmul.f32 %v253, %v911
      %v1020 = vmul.f32 %v254, %v911
      %v1021 = vmul.f32 %v255, %v915
      %v1022 = vmul.f32 %v256, %v915
      %v1023 = vmul.f32 %v257, %v919
      %v1024 = vmul.f32 %v258, %v919
      %v1025 = vmul.f32 %v259, %v923
      %v1026 = vmul.f32 %v260, %v923
      %v1027 = vmul.f32 %v261, %v927
      %v1028 = vmul.f32 %v262, %v927
      %v1029 = vmul.f32 %v263, %v931
      %v1030 = vmul.f32 %v264, %v931
      %v1031 = vmul.f32 %v265, %v938
      %v1032 = vmul.f32 %v266, %v938
      %v1033 = vmul.f32 %v267, %v942
      %v1034 = vmul.f32 %v268, %v942
      %v1035 = vmul.f32 %v269, %v946
      %v1036 = vmul.f32 %v270, %v946
      %v1037 = vmul.f32 %v271, %v950
      %v1038 = vmul.f32 %v272, %v950
      %v1039 = vmul.f32 %v273, %v954
      %v1040 = vmul.f32 %v274, %v954
      %v1041 = vmul.f32 %v275, %v958
      %v1042 = vmul.f32 %v276, %v958
      %v1043 = vmul.f32 %v277, %v962
      %v1044 = vmul.f32 %v278, %v962
      %v1045 = vmul.f32 %v279, %v966
      %v1046 = vmul.f32 %v280, %v966
      %v1047 = vmul.f32 %v281, %v970
      %v1048 = vmul.f32 %v282, %v970
      %v1049 = vmul.f32 %v283, %v974
      %v1050 = vmul.f32 %v284, %v974
      %v1051 = vmul.f32 %v285, %v978
      %v1052 = vmul.f32 %v286, %v978
      %v1053 = vmul.f32 %v287, %v982
      %v1054 = vmul.f32 %v288, %v982
      %v1055 = vmul.f32 %v289, %v986
      %v1056 = vmul.f32 %v290, %v986
      %v1057 = vmul.f32 %v291, %v990
      %v1058 = vmul.f32 %v292, %v990
      %v1059 = vmul.f32 %v293, %v994
      %v1060 = vmul.f32 %v294, %v994
      %v1061 = vmul.f32 %v295, %v998
      %v1062 = vmul.f32 %v296, %v998
      %1063 = vst [vmem:[%s231] sm:$0xff] %v999
      %1064 = vst.msk [vmem:[%s231 + $0x8] sm:$0xff] %vm297, %v1000
      %1065 = vst [vmem:[%s231 + $0x10] sm:$0xff] %v1001
      %1066 = vst.msk [vmem:[%s231 + $0x18] sm:$0xff] %vm297, %v1002
      %1067 = vst [vmem:[%s231 + $0x20] sm:$0xff] %v1003
      %1068 = vst.msk [vmem:[%s231 + $0x28] sm:$0xff] %vm297, %v1004
      %1069 = vst [vmem:[%s231 + $0x30] sm:$0xff] %v1005
      %1070 = vst.msk [vmem:[%s231 + $0x38] sm:$0xff] %vm297, %v1006
      %1071 = vst [vmem:[%s231 + $0x40] sm:$0xff] %v1007
      %1072 = vst.msk [vmem:[%s231 + $0x48] sm:$0xff] %vm297, %v1008
      %1073 = vst [vmem:[%s231 + $0x50] sm:$0xff] %v1009
      %1074 = vst.msk [vmem:[%s231 + $0x58] sm:$0xff] %vm297, %v1010
      %1075 = vst [vmem:[%s231 + $0x60] sm:$0xff] %v1011
      %1076 = vst.msk [vmem:[%s231 + $0x68] sm:$0xff] %vm297, %v1012
      %1077 = vst [vmem:[%s231 + $0x70] sm:$0xff] %v1013
      %1078 = vst.msk [vmem:[%s231 + $0x78] sm:$0xff] %vm297, %v1014
      %1079 = vst [vmem:[%s231 + $0x80] sm:$0xff] %v1015
      %1080 = vst.msk [vmem:[%s231 + $0x88] sm:$0xff] %vm297, %v1016
      %1081 = vst [vmem:[%s231 + $0x90] sm:$0xff] %v1017
      %1082 = vst.msk [vmem:[%s231 + $0x98] sm:$0xff] %vm297, %v1018
      %1083 = vst [vmem:[%s231 + $0xa0] sm:$0xff] %v1019
      %1084 = vst.msk [vmem:[%s231 + $0xa8] sm:$0xff] %vm297, %v1020
      %1085 = vst [vmem:[%s231 + $0xb0] sm:$0xff] %v1021
      %1086 = vst.msk [vmem:[%s231 + $0xb8] sm:$0xff] %vm297, %v1022
      %1087 = vst [vmem:[%s231 + $0xc0] sm:$0xff] %v1023
      %1088 = vst.msk [vmem:[%s231 + $0xc8] sm:$0xff] %vm297, %v1024
      %1089 = vst [vmem:[%s231 + $0xd0] sm:$0xff] %v1025
      %1090 = vst.msk [vmem:[%s231 + $0xd8] sm:$0xff] %vm297, %v1026
      %1091 = vst [vmem:[%s231 + $0xe0] sm:$0xff] %v1027
      %1092 = vst.msk [vmem:[%s231 + $0xe8] sm:$0xff] %vm297, %v1028
      %1093 = vst [vmem:[%s231 + $0xf0] sm:$0xff] %v1029
      %1094 = vst.msk [vmem:[%s231 + $0xf8] sm:$0xff] %vm297, %v1030
      %1095 = vst [vmem:[%s231 + $0x100] sm:$0xff] %v1031
      %1096 = vst.msk [vmem:[%s231 + $0x108] sm:$0xff] %vm297, %v1032
      %1097 = vst [vmem:[%s231 + $0x110] sm:$0xff] %v1033
      %1098 = vst.msk [vmem:[%s231 + $0x118] sm:$0xff] %vm297, %v1034
      %1099 = vst [vmem:[%s231 + $0x120] sm:$0xff] %v1035
      %1100 = vst.msk [vmem:[%s231 + $0x128] sm:$0xff] %vm297, %v1036
      %1101 = vst [vmem:[%s231 + $0x130] sm:$0xff] %v1037
      %1102 = vst.msk [vmem:[%s231 + $0x138] sm:$0xff] %vm297, %v1038
      %1103 = vst [vmem:[%s231 + $0x140] sm:$0xff] %v1039
      %1104 = vst.msk [vmem:[%s231 + $0x148] sm:$0xff] %vm297, %v1040
      %1105 = vst [vmem:[%s231 + $0x150] sm:$0xff] %v1041
      %1106 = vst.msk [vmem:[%s231 + $0x158] sm:$0xff] %vm297, %v1042
      %1107 = vst [vmem:[%s231 + $0x160] sm:$0xff] %v1043
      %1108 = vst.msk [vmem:[%s231 + $0x168] sm:$0xff] %vm297, %v1044
      %1109 = vst [vmem:[%s231 + $0x170] sm:$0xff] %v1045
      %1110 = vst.msk [vmem:[%s231 + $0x178] sm:$0xff] %vm297, %v1046
      %1111 = vst [vmem:[%s231 + $0x180] sm:$0xff] %v1047
      %1112 = vst.msk [vmem:[%s231 + $0x188] sm:$0xff] %vm297, %v1048
      %1113 = vst [vmem:[%s231 + $0x190] sm:$0xff] %v1049
      %1114 = vst.msk [vmem:[%s231 + $0x198] sm:$0xff] %vm297, %v1050
      %1115 = vst [vmem:[%s231 + $0x1a0] sm:$0xff] %v1051
      %1116 = vst.msk [vmem:[%s231 + $0x1a8] sm:$0xff] %vm297, %v1052
      %1117 = vst [vmem:[%s231 + $0x1b0] sm:$0xff] %v1053
      %1118 = vst.msk [vmem:[%s231 + $0x1b8] sm:$0xff] %vm297, %v1054
      %1119 = vst [vmem:[%s231 + $0x1c0] sm:$0xff] %v1055
      %1120 = vst.msk [vmem:[%s231 + $0x1c8] sm:$0xff] %vm297, %v1056
      %1121 = vst [vmem:[%s231 + $0x1d0] sm:$0xff] %v1057
      %1122 = vst.msk [vmem:[%s231 + $0x1d8] sm:$0xff] %vm297, %v1058
      %1123 = vst [vmem:[%s231 + $0x1e0] sm:$0xff] %v1059
      %1124 = vst.msk [vmem:[%s231 + $0x1e8] sm:$0xff] %vm297, %v1060
      %1125 = vst [vmem:[%s231 + $0x1f0] sm:$0xff] %v1061
      %1126 = vst.msk [vmem:[%s231 + $0x1f8] sm:$0xff] %vm297, %v1062
      %s1127 = smul.u32 2, %s16
      %p1128 = scmp.lt.s32.totalorder %s1127, 3
      %s1129 = scalar_select %p1128, %s1127, 3
      %s1130 = smul.addr %s1129, 32
      %s1131 = smul.addr %s1130, 8
      %s1132 = scalar_lea.vmem %s5, %s1131
      // Predicated region
      $region41: #{tpu_custom_call.1} parent=39 // pred_check
        %p1133 = pneg %p144
      $region42: #{tpu_custom_call.1} parent=39 // pred_check_branch
        %1135 = sbr.rel (%p1133) target = $region44
      $region43: #{tpu_custom_call.1} parent=39 // pred_region
        %s1136 = smul.u32 2, %s16
      $region44: #{tpu_custom_call.1} parent=39 // pred_fallthru
        _
    $region40: #{tpu_custom_call.1} parent=5 // pred_fallthru
      _
    %p1137 = scmp.le.s32.totalorder 2, %s11
    // Predicated region
    $region45: #{tpu_custom_call.1} parent=5 // pred_check
      %p1138 = pneg %p1137
    $region46: #{tpu_custom_call.1} parent=5 // pred_check_branch
      %1140 = sbr.rel (%p1138) target = $region48
    $region47: #{tpu_custom_call.1} parent=5 // pred_region
      %s1141 = ssub.s32 %s11, 2
      // Predicated region
      $region49: #{tpu_custom_call.1} parent=47 // pred_check
        %p1142 = pneg %p150
      $region50: #{tpu_custom_call.1} parent=47 // pred_check_branch
        %1144 = sbr.rel (%p1142) target = $region52
      $region51: #{tpu_custom_call.1} parent=47 // pred_region
        %s1145 = smul.u32 2, %s17
        %p1146 = scmp.lt.s32.totalorder %s1145, 3
        %s1147 = scalar_select %p1146, %s1145, 3
        %s1148 = smul.addr %s1147, 32
        %s1149 = smul.addr %s1148, 8
        %s1150 = scalar_lea.vmem %s5, %s1149
      $region52: #{tpu_custom_call.1} parent=47 // pred_fallthru
        _
    $region48: #{tpu_custom_call.1} parent=5 // pred_fallthru
      _
  $region6: #{tpu_custom_call.1} parent=0 // loop_footer
    %s15 = sadd.s32 1, %s11
  $region7: #{tpu_custom_call.1} parent=0 // loop_footer_branch
    %10 = sbr.rel target = $region3
  $region8: #{tpu_custom_call.1} parent=0 // loop_exit
    _

</llo_original>
